<compile_context>
chip_gen: v7x
topology: tpu7x:2x2x1
jax: 0.10.0
libtpu: 0.0.40
codegen_flags: <defaults>
</compile_context>

<pallas_src>
import numpy as np
import jax
import jax.numpy as jnp
from jax.experimental import pallas as pl
from jax.experimental.pallas import tpu as pltpu


def _round_up(x, m):
    return ((x + m - 1) // m) * m


def _tpu_vmem_and_cores():
    """Best-effort chip query: (per-core VMEM bytes, # independent TensorCores)."""
    kind = ""
    try:
        kind = (jax.devices()[0].device_kind or "").lower()
    except Exception:
        pass
    num_cores = 2 if ("v7" in kind or "tpu7" in kind) else 1

    vmem = None
    try:
        vmem = int(pltpu.get_tpu_info().vmem_capacity_bytes)
    except Exception:
        vmem = None
    if vmem is None:
        vmem = (64 << 20) if num_cores == 2 else (128 << 20)
    return vmem, num_cores


def _ce_partial_kernel(logits_ref, targ_ref, out_ref):
    # logits_ref: (BB, C) native dtype ; targ_ref: (BB, 1) int32 (-1 == padded row)
    # out_ref:    (1, 1)  f32 SMEM partial sum, resident across the reduction axis.
    step = pl.program_id(1)

    @pl.when(step == 0)
    def _():
        out_ref[0, 0] = jnp.float32(0.0)

    x = logits_ref[...]                                   # native dtype (bf16/f32)
    t = targ_ref[...]                                     # (BB, 1) int32

    # Row max in native dtype (exact for max), centered logits in f32.
    m = jnp.max(x, axis=-1, keepdims=True)
    xm = x.astype(jnp.float32) - m.astype(jnp.float32)    # (BB, C) f32

    # logsumexp(x) - x[t] == log(sum(exp(x - m))) - (x[t] - m): the +m cancels.
    lse_m = jnp.log(jnp.sum(jnp.exp(xm), axis=-1, keepdims=True))       # (BB, 1)

    # Gather xm[b, t_b] via lane-iota one-hot (vectorized, no per-row scalar loop).
    # TODO(synk): out-of-range targets (t >= C) silently yield picked = 0 instead of
    # raising like PyTorch's F.one_hot.
    col = jax.lax.broadcasted_iota(jnp.int32, xm.shape, 1)
    picked_m = jnp.sum(jnp.where(col == t, xm, 0.0), axis=-1, keepdims=True)

    valid = (t >= 0).astype(jnp.float32)                  # mask rows added by padding
    out_ref[0, 0] += jnp.sum((lse_m - picked_m) * valid)


def log_softmax_kl_loss(outputs, targets, loss_fn=None):
    """Pallas implementation of LogSoftmaxWrapper.forward (returns scalar loss)."""
    outputs = jnp.asarray(outputs)
    targets = jnp.asarray(targets)
    if outputs.ndim == 3:
        outputs = outputs[:, 0, :]                        # .squeeze(1)
    if targets.ndim == 2:
        targets = targets[:, 0]                           # .squeeze(1)
    targets = targets.astype(jnp.int32)
    B, C = outputs.shape

    if loss_fn is not None:
        # TODO(synk): margin transforms (AngularMargin / AdditiveAngularMargin) and the
        # torch try/except-TypeError dispatch are resolved here at Python trace time as
        # plain JAX ops; the Pallas kernel handles one_hot + log_softmax + KLDiv/sum.
        one_hot = jax.nn.one_hot(targets, C, dtype=outputs.dtype)
        try:
            outputs = loss_fn(outputs, one_hot)
        except TypeError:
            outputs = loss_fn(outputs)

    # ---- chip-aware block sizing -------------------------------------------------
    vmem_cap, num_cores = _tpu_vmem_and_cores()
    vmem_limit = int(min((vmem_cap * 3) // 4, 96 << 20))  # explicit scoped-VMEM limit

    itemsize = outputs.dtype.itemsize
    # Per-row VMEM footprint: double-buffered native input (2*itemsize/elem) plus
    # ~5 block-sized f32/i32 temporaries (xm, exp(xm), iota, compare, select).
    bytes_per_row = C * (2 * itemsize + 20)
    usable = int(vmem_limit * 0.85)
    rows_budget = (usable // max(1, bytes_per_row)) // 8 * 8
    rows_budget = max(8, min(rows_budget, 65536))

    BB = min(_round_up(B, 8), rows_budget)
    chunk = BB * num_cores
    B_pad = _round_up(B, chunk)
    if B_pad != B:
        # Keep zero padding: padded rows stay finite and are masked via target == -1.
        outputs = jnp.pad(outputs, ((0, B_pad - B), (0, 0)))
        targets = jnp.pad(targets, (0, B_pad - B), constant_values=-1)
    targets2d = targets.reshape(B_pad, 1)

    steps = B_pad // chunk
    grid = (num_cores, steps)

    cost = pl.CostEstimate(
        flops=5 * B_pad * C,
        transcendentals=B_pad * C,
        bytes_accessed=B_pad * C * itemsize + B_pad * 4,
    )

    partials = pl.pallas_call(
        _ce_partial_kernel,
        out_shape=jax.ShapeDtypeStruct((num_cores, 1), jnp.float32),
        grid=grid,
        in_specs=[
            pl.BlockSpec((BB, C), lambda c, i: (c * steps + i, 0)),  # logits
            pl.BlockSpec((BB, 1), lambda c, i: (c * steps + i, 0)),  # int32 targets
        ],
        out_specs=pl.BlockSpec((1, 1), lambda c, i: (c, 0),
                               memory_space=pltpu.MemorySpace.SMEM),
        compiler_params=pltpu.CompilerParams(
            # c axis: independent per-core partials; i axis: reduction into resident SMEM.
            dimension_semantics=("parallel", "arbitrary"),
            vmem_limit_bytes=vmem_limit),
        cost_estimate=cost,
    )(outputs, targets2d)

    # KLDiv(log_softmax, one_hot, 'sum') / one_hot.sum()  ==  mean cross-entropy.
    return jnp.sum(partials) / jnp.float32(B)


class LogSoftmaxWrapperPallas:
    """JAX/Pallas equivalent of speechbrain LogSoftmaxWrapper(loss_fn)."""

    def __init__(self, loss_fn=None):
        self.loss_fn = loss_fn

    def forward(self, outputs, targets, length=None):
        return log_softmax_kl_loss(outputs, targets, self.loss_fn)

    __call__ = forward


def _reference_loss(outputs, targets):
    """Numpy reference reproducing the PyTorch forward semantics (Identity loss_fn)."""
    x = np.asarray(jnp.asarray(outputs, jnp.float32))
    if x.ndim == 3:
        x = x[:, 0, :]
    t = np.asarray(targets).reshape(-1).astype(np.int64)
    m = x.max(axis=1, keepdims=True)
    lse = np.log(np.exp(x - m).sum(axis=1, keepdims=True))[:, 0] + m[:, 0]
    nll = lse - x[np.arange(x.shape[0]), t]
    return float(nll.mean())        # KLDiv(sum) / one_hot.sum() == mean CE


if __name__ == "__main__":
    key = jax.random.PRNGKey(0)
    k1, k2, k3, k4 = jax.random.split(key, 4)

    wrapper = LogSoftmaxWrapperPallas()   # Identity loss_fn

    # Test 1: doctest-style example from the module (loss in [0, 1)).
    outputs = jnp.array([[1., -1.], [-1., 1.], [0.9, 0.1], [0.1, 0.9]],
                        jnp.float32)[:, None, :]                  # [4, 1, 2]
    targets = jnp.array([[0], [1], [0], [1]], jnp.int32)          # [4, 1]
    loss1 = jax.block_until_ready(wrapper(outputs, targets))
    ref1 = _reference_loss(outputs, targets)
    assert 0.0 <= float(loss1) < 1.0, loss1
    assert np.allclose(float(loss1), ref1, atol=1e-5), (float(loss1), ref1)

    # Test 2: random logits, batch=8, outdim=128 (lane-dense class axis).
    B, C = 8, 128
    logits = jax.random.normal(k1, (B, 1, C), dtype=jnp.float32)
    tgt = jax.random.randint(k2, (B, 1), 0, C, dtype=jnp.int32)
    loss2 = jax.block_until_ready(wrapper(logits, tgt))
    ref2 = _reference_loss(logits, tgt)
    assert np.allclose(float(loss2), ref2, atol=1e-5), (float(loss2), ref2)

    # Test 3: bf16 inputs DMA'd in native dtype, f32 accumulation in-kernel.
    logits_bf16 = logits.astype(jnp.bfloat16)
    loss3 = jax.block_until_ready(wrapper(logits_bf16, tgt))
    ref3 = _reference_loss(jnp.asarray(logits_bf16, jnp.float32), tgt)
    assert np.allclose(float(loss3), ref3, atol=1e-4), (float(loss3), ref3)

    # Test 4: C not a multiple of 128 + batch padding (masked lanes & rows).
    B4, C4 = 5, 203
    l4 = jax.random.normal(k3, (B4, 1, C4), dtype=jnp.float32)
    t4 = jax.random.randint(k4, (B4, 1), 0, C4, dtype=jnp.int32)
    loss4 = jax.block_until_ready(wrapper(l4, t4))
    ref4 = _reference_loss(l4, t4)
    assert np.allclose(float(loss4), ref4, atol=1e-5), (float(loss4), ref4)

    print("KERNEL_OK")
</pallas_src>

<mosaic_0001>
module attributes {stable_mosaic.version = 11 : i64} {
  func.func @_ce_partial_kernel(%arg0: i32, %arg1: i32, %arg2: memref<8x2xf32, #tpu.memory_space<vmem>>, %arg3: memref<8x1xi32, #tpu.memory_space<vmem>>, %arg4: memref<1x1xf32, #tpu.memory_space<smem>>) attributes {dimension_semantics = [#tpu.dimension_semantics<parallel>, #tpu.dimension_semantics<arbitrary>], iteration_bounds = array<i64: 1, 1>, scalar_prefetch = 0 : i64, scratch_operands = 0 : i64, tpu.core_type = #tpu.core_type<tc>, window_params = [{transform_indices = @transform_0, window_bounds = array<i64: 8, 2>}, {transform_indices = @transform_1, window_bounds = array<i64: 8, 1>}, {transform_indices = @transform_2, window_bounds = array<i64: 1, 1>}]} {
    %c0_i32 = arith.constant 0 : i32
    %0 = arith.cmpi eq, %arg1, %c0_i32 : i32
    %1 = arith.extui %0 : i1 to i32
    %c0_i32_0 = arith.constant 0 : i32
    %2 = arith.cmpi ne, %1, %c0_i32_0 : i32
    scf.if %2 {
      %cst_13 = arith.constant 0.000000e+00 : f32
      %c0_14 = arith.constant 0 : index
      %c0_15 = arith.constant 0 : index
      %33 = memref.load %arg4[%c0_14, %c0_15] : memref<1x1xf32, #tpu.memory_space<smem>>
      memref.store %cst_13, %arg4[%c0_14, %c0_15] : memref<1x1xf32, #tpu.memory_space<smem>>
    } else {
    }
    %c0 = arith.constant 0 : index
    %c0_1 = arith.constant 0 : index
    %3 = vector.load %arg2[%c0, %c0_1] : memref<8x2xf32, #tpu.memory_space<vmem>>, vector<8x2xf32>
    %c0_2 = arith.constant 0 : index
    %c0_3 = arith.constant 0 : index
    %4 = vector.load %arg3[%c0_2, %c0_3] : memref<8x1xi32, #tpu.memory_space<vmem>>, vector<8x1xi32>
    %cst = arith.constant dense<0xFF800000> : vector<8xf32>
    %5 = vector.multi_reduction <maximumf>, %3, %cst [1] : vector<8x2xf32> to vector<8xf32>
    %6 = vector.shape_cast %5 : vector<8xf32> to vector<8x1xf32>
    %7 = vector.broadcast %6 : vector<8x1xf32> to vector<8x2xf32>
    %8 = arith.subf %3, %7 : vector<8x2xf32>
    %9 = math.exp %8 : vector<8x2xf32>
    %cst_4 = arith.constant dense<0.000000e+00> : vector<8xf32>
    %10 = vector.multi_reduction <add>, %9, %cst_4 [1] : vector<8x2xf32> to vector<8xf32>
    %11 = vector.shape_cast %10 : vector<8xf32> to vector<8x1xf32>
    %12 = math.log %11 : vector<8x1xf32>
    %13 = tpu.iota {dimensions = array<i32: 1>} : vector<8x2xi32>
    %14 = vector.broadcast %4 : vector<8x1xi32> to vector<8x2xi32>
    %15 = arith.cmpi eq, %13, %14 : vector<8x2xi32>
    %cst_5 = arith.constant 0.000000e+00 : f32
    %16 = vector.broadcast %cst_5 : f32 to vector<8x2xf32>
    %17 = arith.select %15, %8, %16 : vector<8x2xi1>, vector<8x2xf32>
    %cst_6 = arith.constant dense<0.000000e+00> : vector<8xf32>
    %18 = vector.multi_reduction <add>, %17, %cst_6 [1] : vector<8x2xf32> to vector<8xf32>
    %19 = vector.shape_cast %18 : vector<8xf32> to vector<8x1xf32>
    %c0_i32_7 = arith.constant 0 : i32
    %20 = vector.broadcast %c0_i32_7 : i32 to vector<8x1xi32>
    %21 = arith.cmpi sge, %4, %20 : vector<8x1xi32>
    %22 = arith.extui %21 : vector<8x1xi1> to vector<8x1xi32>
    %23 = arith.sitofp %22 : vector<8x1xi32> to vector<8x1xf32>
    %c0_8 = arith.constant 0 : index
    %c0_9 = arith.constant 0 : index
    %24 = memref.load %arg4[%c0_8, %c0_9] : memref<1x1xf32, #tpu.memory_space<smem>>
    %25 = arith.subf %12, %19 : vector<8x1xf32>
    %26 = arith.mulf %25, %23 : vector<8x1xf32>
    %27 = vector.shape_cast %26 : vector<8x1xf32> to vector<1x8x1xf32>
    %cst_10 = arith.constant dense<0.000000e+00> : vector<1xf32>
    %28 = vector.multi_reduction <add>, %27, %cst_10 [1, 2] : vector<1x8x1xf32> to vector<1xf32>
    %29 = vector.shape_cast %28 : vector<1xf32> to vector<1x1x1xf32>
    %30 = vector.extract %29[0, 0, 0] : f32 from vector<1x1x1xf32>
    %31 = arith.addf %24, %30 : f32
    %c0_11 = arith.constant 0 : index
    %c0_12 = arith.constant 0 : index
    %32 = memref.load %arg4[%c0_11, %c0_12] : memref<1x1xf32, #tpu.memory_space<smem>>
    memref.store %31, %arg4[%c0_11, %c0_12] : memref<1x1xf32, #tpu.memory_space<smem>>
    return
  }
  func.func @transform_0(%arg0: i32, %arg1: i32) -> (i32, i32) {
    %c1_i32 = arith.constant 1 : i32
    %0 = arith.muli %arg0, %c1_i32 : i32
    %1 = arith.addi %0, %arg1 : i32
    %c0_i32 = arith.constant 0 : i32
    %c0_i32_0 = arith.constant 0 : i32
    return %1, %c0_i32 : i32, i32
  }
  func.func @transform_1(%arg0: i32, %arg1: i32) -> (i32, i32) {
    %c1_i32 = arith.constant 1 : i32
    %0 = arith.muli %arg0, %c1_i32 : i32
    %1 = arith.addi %0, %arg1 : i32
    %c0_i32 = arith.constant 0 : i32
    %c0_i32_0 = arith.constant 0 : i32
    return %1, %c0_i32 : i32, i32
  }
  func.func @transform_2(%arg0: i32, %arg1: i32) -> (i32, i32) {
    %c0_i32 = arith.constant 0 : i32
    %c0_i32_0 = arith.constant 0 : i32
    return %arg0, %c0_i32 : i32, i32
  }
}

</mosaic_0001>

<llo_original>
// kernel: tpu_custom_call.1
$region0: #{tpu_custom_call.1}
  #allocation0 [shape = 'u32[]', space=smem, size = 0x4, offset = 0x4, fixed_abs, tag = 'smem constant byte address 0x4 - core index']
  #allocation1 [shape = 'u32[144,128]{1,0:T(1,128)}', space=vmem, size = 0x12000, scoped, tag = 'internal scratch']
  %s0 = inlined_call_operand.hbm [shape: f32[8,2], index: 0, kind: input, shape index: {}]
  %s1 = inlined_call_operand.hbm [shape: s32[8,1], index: 1, kind: input, shape index: {}]
  %s2 = inlined_call_operand.hbm [shape: f32[1,1], index: 2, kind: output, shape index: {}]
  %s3 = sld [smem:[#allocation0]]
  $region30: #{tpu_custom_call.1} parent=0
    _
  %s5 = ssub.s32 1, %s3
  %s6 = scalar_select 0, %s5, %s3
  $region1: #{tpu_custom_call.1} parent=0
    #allocation2 [shape = 'u8[4096]{0}', space=vmem, size = 0x1000, scoped, tag = 'input window, operand 0, single buffered']
    #allocation3 [shape = 's32[1]{0}', space=sflag, size = 0x4, scoped, tag = 'scoped memory for tpu_custom_call.1']
    #allocation4 [shape = 's32[1]{0}', space=sflag, size = 0x4, scoped, tag = 'scoped memory for tpu_custom_call.1']
    #allocation5 [shape = 'u8[4096]{0}', space=vmem, size = 0x1000, scoped, tag = 'input window, operand 1, single buffered']
    #allocation6 [shape = 's32[1]{0}', space=sflag, size = 0x4, scoped, tag = 'scoped memory for tpu_custom_call.1']
    #allocation7 [shape = 'u8[512]{0}', space=smem, size = 0x200, scoped, tag = 'output window, operand 0, single buffered']
    %7 = vsyncpa [#allocation3], 0
    %8 = vsyncpa [#allocation6], 0
    %9 = vsyncpa [#allocation4], 0
    // Predicated region
    $region2: #{tpu_custom_call.1} parent=1 // pred_check
      _
    $region3: #{tpu_custom_call.1} parent=1 // pred_check_branch
      %11 = sbr.rel (0) target = $region5
    $region4: #{tpu_custom_call.1} parent=1 // pred_region
      %s12 = sadd.s32 0, 0
      %s14 = ssub.s32 128, 128
      %15 = vsyncadd [#allocation3], %s14
      %s16 = smul.addr %s12, 128
      %s17 = scalar_lea.hbm %s0, %s16
      %s19 = sshll.u32 [#allocation2], 4
      %s20 = int_to_ptr.vmem [resolvable:$true] %s19
      %22 = dma.hbm_to_vmem [thread:$0]  %s17, 128, %s20, [#allocation3]
    $region5: #{tpu_custom_call.1} parent=1 // pred_fallthru
      _
    // Predicated region
    $region6: #{tpu_custom_call.1} parent=1 // pred_check
      _
    $region7: #{tpu_custom_call.1} parent=1 // pred_check_branch
      %24 = sbr.rel (0) target = $region9
    $region8: #{tpu_custom_call.1} parent=1 // pred_region
      %s25 = sadd.s32 0, 0
      %s27 = ssub.s32 128, 128
      %28 = vsyncadd [#allocation6], %s27
      %s29 = smul.addr %s25, 128
      %s30 = scalar_lea.hbm %s1, %s29
      %s32 = sshll.u32 [#allocation5], 4
      %s33 = int_to_ptr.vmem [resolvable:$true] %s32
      %35 = dma.hbm_to_vmem [thread:$0]  %s30, 128, %s33, [#allocation6]
    $region9: #{tpu_custom_call.1} parent=1 // pred_fallthru
      _
    // Predicated region
    $region10: #{tpu_custom_call.1} parent=1 // pred_check
      _
    $region11: #{tpu_custom_call.1} parent=1 // pred_check_branch
      %37 = sbr.rel (0) target = $region13
    $region12: #{tpu_custom_call.1} parent=1 // pred_region
      %38 = dma.done [#allocation3], 128
    $region13: #{tpu_custom_call.1} parent=1 // pred_fallthru
      _
    // Predicated region
    $region14: #{tpu_custom_call.1} parent=1 // pred_check
      _
    $region15: #{tpu_custom_call.1} parent=1 // pred_check_branch
      %40 = sbr.rel (0) target = $region17
    $region16: #{tpu_custom_call.1} parent=1 // pred_region
      %41 = dma.done [#allocation6], 128
    $region17: #{tpu_custom_call.1} parent=1 // pred_fallthru
      _
    %s42 = sadd.s32 0, 0
    %s43 = sadd.s32 0, 0
    %p44 = scmp.eq.s32.totalorder 0, 0
    // Predicated region
    $region18: #{tpu_custom_call.1} parent=1 // pred_check
      %p45 = pneg %p44
    $region19: #{tpu_custom_call.1} parent=1 // pred_check_branch
      %47 = sbr.rel (%p45) target = $region21
    $region20: #{tpu_custom_call.1} parent=1 // pred_region
      %s48 = scalar_lea.smem [#allocation7], 0
      %49 = sst [smem:[%s48]] 0.0
    $region21: #{tpu_custom_call.1} parent=1 // pred_fallthru
      _
    %v50 = vld [vmem:[#allocation2] sm:$0xff]
    %v51 = vld [vmem:[#allocation5] sm:$0xff]
    %vm52 = vcmask 15360
    %v53 = vsel %vm52, %v50, -inf
    %54 = vmax.xlane.f32.xlu0 %v53
    %v55 = vpop.xlane.xlu0 %54
    %v56 = vsub.f32 %v50, %v55
    %v57 = vmul.f32 %v56, 1.442695
    %v58 = vpow.pop %v57
    %v59 = vsel %vm52, %v58, 0.0
    %60 = vadd.xlane.f32.xlu0 %v59
    %v61 = vpop.xlane.xlu0 %60
    %v62 = vlog2.pop %v61
    %v63 = vmul.f32 %v62, 0.6931472
    %v64 = vlaneseq
    %v65 = vand.u32 %v64, 127
    %66 = vset.pattern.permute.xlu0 0
    %67 = vperm.xlu0 %66, %v51
    %v68 = vpop.permute.xlu0 %67
    %vm69 = vcmp.eq.s32.totalorder %v65, %v68
    %v70 = vsel %vm69, %v56, 0.0
    %v71 = vsel %vm52, %v70, 0.0
    %72 = vadd.xlane.f32.xlu0 %v71
    %v73 = vpop.xlane.xlu0 %72
    %vm74 = vcmp.ge.s32.totalorder %v51, 0
    %v75 = vsel %vm74, 1, 0
    %v76 = vcvt.s32.f32 %v75
    %s77 = sld [smem:[#allocation7]]
    %v78 = vsub.f32 %v63, %v73
    %v79 = vmul.f32 %v78, %v76
    %vm80 = vcmask 7168
    %v81 = vsel %vm80, %v79, 0.0
    %82 = vadd.xlane.f32.xlu0 %v81
    %v83 = vpop.xlane.xlu0 %82
    %v84 = vrot.slane %v83, 4
    %v85 = vadd.f32 %v83, %v84
    %v86 = vrot.slane %v85, 2
    %v87 = vadd.f32 %v85, %v86
    %v88 = vrot.slane %v87, 1
    %v89 = vadd.f32 %v87, %v88
    %s90 = vtos %v89
    %s91 = sadd.f32 %s77, %s90
    %s92 = scalar_lea.smem [#allocation7], 0
    %93 = sst [smem:[%s92]] %s91
    // Predicated region
    $region22: #{tpu_custom_call.1} parent=1 // pred_check
      _
    $region23: #{tpu_custom_call.1} parent=1 // pred_check_branch
      %95 = sbr.rel (0) target = $region25
    $region24: #{tpu_custom_call.1} parent=1 // pred_region
      %s97 = ssub.s32 16, 16
      %98 = vsyncadd [#allocation4], %s97
      %101 = dma.smem_to_hbm [#allocation7], 16, %s2, [#allocation4]
    $region25: #{tpu_custom_call.1} parent=1 // pred_fallthru
      _
    // Predicated region
    $region26: #{tpu_custom_call.1} parent=1 // pred_check
      _
    $region27: #{tpu_custom_call.1} parent=1 // pred_check_branch
      %103 = sbr.rel (0) target = $region29
    $region28: #{tpu_custom_call.1} parent=1 // pred_region
      %104 = dma.done [#allocation4], 16
    $region29: #{tpu_custom_call.1} parent=1 // pred_fallthru
      _
    %105 = sfence
    %106 = vsyncpa [#allocation3], 1
    %107 = vsyncpa [#allocation6], 1
    %108 = vsyncpa [#allocation4], 1

</llo_original>
